<compile_context>
chip_gen: v5e
topology: v5e:2x2
jax: 0.10.0
libtpu: 0.0.40
codegen_flags: <defaults>
</compile_context>

<pallas_src>
import functools

import jax
import jax.numpy as jnp
from jax.experimental import pallas as pl
from jax.experimental.pallas import tpu as pltpu


def _round_up(x: int, m: int) -> int:
    return ((x + m - 1) // m) * m


def _triplet_partial_kernel(a_ref, p_ref, n_ref, out_ref, *,
                            margin: float, total_b: int, tb: int):
    # Load in native dtype, compute in f32.
    a = a_ref[...].astype(jnp.float32)            # (TB, D)
    p = p_ref[...].astype(jnp.float32)
    n = n_ref[...].astype(jnp.float32)

    d_ap = a - p
    d_an = a - n

    d2_ap = jnp.sum(d_ap * d_ap, axis=1, keepdims=True)   # (TB, 1)
    d2_an = jnp.sum(d_an * d_an, axis=1, keepdims=True)   # (TB, 1)

    hinge = jnp.maximum(jnp.sqrt(d2_ap) - jnp.sqrt(d2_an) + jnp.float32(margin),
                        0.0)                               # (TB, 1)

    # Mask rows past the true batch size (ragged final tile — no wrapper pad).
    row = pl.program_id(0) * tb + jax.lax.broadcasted_iota(jnp.int32, (tb, 1), 0)
    hinge = jnp.where(row < total_b, hinge, 0.0)

    # Per-tile partial sum; the mean (divide by true B) happens in the wrapper.
    out_ref[...] = jnp.sum(hinge, axis=0, keepdims=True).reshape(1, 1, 1)


def _vmem_budgets():
    """(input_budget_bytes, vmem_limit_bytes) per TPU generation."""
    try:
        cap = pltpu.get_tpu_info().vmem_capacity_bytes
    except Exception:  # unknown chip / emulator — stay conservative
        cap = None
    if cap is not None and cap >= 100 * 1024 * 1024:
        # v5e / v6e: 128 MiB physical VMEM per TensorCore.
        return 48 * 1024 * 1024, 64 * 1024 * 1024
    # v7x (64 MiB physical VMEM) or unknown.
    return 32 * 1024 * 1024, 48 * 1024 * 1024


def triplet_loss_net(anchor, positive, negative, margin: float = 1.0,
                     block_b: int | None = None):
    """Pallas wrapper. anchor/positive/negative: (B, D). Returns scalar f32 loss."""
    assert anchor.shape == positive.shape == negative.shape
    assert anchor.ndim == 2
    B, D = anchor.shape

    input_budget, vmem_limit = _vmem_budgets()

    # Sublane alignment: 8 rows for 4-byte dtypes, 16 for bf16, 32 for 1-byte.
    min_itemsize = min(jnp.dtype(x.dtype).itemsize
                       for x in (anchor, positive, negative))
    mult = max(8, 32 // int(min_itemsize))

    # Bytes per batch-row per pipeline step: 2 buffers x D x (sum of itemsizes).
    per_row_bytes = 2 * D * sum(int(jnp.dtype(x.dtype).itemsize)
                                for x in (anchor, positive, negative))

    if block_b is None:
        tb = max(mult, (input_budget // per_row_bytes) // mult * mult)
    else:
        tb = max(mult, _round_up(int(block_b), mult))
    # Never bigger than the (aligned) batch.
    tb = min(tb, _round_up(B, mult))
    # Keep >= 2 grid steps when the batch allows it (v7x megacore sharding;
    # neutral on single-TC chips since per-step overhead << HBM time per tile).
    tb = min(tb, max(mult, _round_up(-(-B // 2), mult)))

    num_tiles = -(-B // tb)  # pl.cdiv, on Python ints

    kernel = functools.partial(
        _triplet_partial_kernel, margin=float(margin), total_b=B, tb=tb)

    partials = pl.pallas_call(
        kernel,
        out_shape=jax.ShapeDtypeStruct((num_tiles, 1, 1), jnp.float32),
        grid=(num_tiles,),
        in_specs=[
            pl.BlockSpec((tb, D), lambda i: (i, 0)),
            pl.BlockSpec((tb, D), lambda i: (i, 0)),
            pl.BlockSpec((tb, D), lambda i: (i, 0)),
        ],
        out_specs=pl.BlockSpec((1, 1, 1), lambda i: (i, 0, 0)),
        compiler_params=pltpu.CompilerParams(
            dimension_semantics=("parallel",),
            vmem_limit_bytes=vmem_limit,
        ),
    )(anchor, positive, negative)

    return jnp.sum(partials) / jnp.float32(B)


def _reference(anchor, positive, negative, margin=1.0):
    a = anchor.astype(jnp.float32)
    p = positive.astype(jnp.float32)
    n = negative.astype(jnp.float32)
    dist_ap = jnp.sqrt(jnp.sum((a - p) ** 2, axis=1))
    dist_an = jnp.sqrt(jnp.sum((a - n) ** 2, axis=1))
    return jnp.mean(jnp.maximum(dist_ap - dist_an + margin, 0.0))


if __name__ == "__main__":
    key = jax.random.PRNGKey(0)

    # Case 1: small f32, tile == batch (single grid step).
    k_a, k_p, k_n = jax.random.split(key, 3)
    B, D = 8, 128
    a = jax.random.normal(k_a, (B, D), dtype=jnp.float32)
    p = jax.random.normal(k_p, (B, D), dtype=jnp.float32)
    n = jax.random.normal(k_n, (B, D), dtype=jnp.float32)
    loss = jax.block_until_ready(triplet_loss_net(a, p, n, margin=1.0))
    ref = _reference(a, p, n, margin=1.0)
    assert jnp.allclose(loss, ref, rtol=1e-5, atol=1e-5), (loss, ref)

    # Case 2: batch not a multiple of the tile — ragged last block, NO padding.
    k_a2, k_p2, k_n2 = jax.random.split(jax.random.PRNGKey(1), 3)
    B2, D2 = 20, 128
    a2 = jax.random.normal(k_a2, (B2, D2), dtype=jnp.float32)
    p2 = jax.random.normal(k_p2, (B2, D2), dtype=jnp.float32)
    n2 = jax.random.normal(k_n2, (B2, D2), dtype=jnp.float32)
    loss2 = jax.block_until_ready(triplet_loss_net(a2, p2, n2, margin=0.5))
    ref2 = _reference(a2, p2, n2, margin=0.5)
    assert jnp.allclose(loss2, ref2, rtol=1e-5, atol=1e-5), (loss2, ref2)

    # Case 3: forced small tile -> multi-tile grid with partial-sum reduction.
    k_a3, k_p3, k_n3 = jax.random.split(jax.random.PRNGKey(2), 3)
    B3, D3 = 40, 128
    a3 = jax.random.normal(k_a3, (B3, D3), dtype=jnp.float32)
    p3 = jax.random.normal(k_p3, (B3, D3), dtype=jnp.float32)
    n3 = jax.random.normal(k_n3, (B3, D3), dtype=jnp.float32)
    loss3 = jax.block_until_ready(triplet_loss_net(a3, p3, n3, margin=1.0, block_b=8))
    ref3 = _reference(a3, p3, n3, margin=1.0)
    assert jnp.allclose(loss3, ref3, rtol=1e-5, atol=1e-5), (loss3, ref3)

    # Case 4: native bf16 inputs (no wrapper upcast; kernel casts after load),
    # ragged last tile with the 16-row sublane-packed alignment.
    k_a4, k_p4, k_n4 = jax.random.split(jax.random.PRNGKey(3), 3)
    B4, D4 = 24, 256
    a4 = jax.random.normal(k_a4, (B4, D4), dtype=jnp.float32).astype(jnp.bfloat16)
    p4 = jax.random.normal(k_p4, (B4, D4), dtype=jnp.float32).astype(jnp.bfloat16)
    n4 = jax.random.normal(k_n4, (B4, D4), dtype=jnp.float32).astype(jnp.bfloat16)
    loss4 = jax.block_until_ready(triplet_loss_net(a4, p4, n4, margin=1.0))
    ref4 = _reference(a4, p4, n4, margin=1.0)
    assert jnp.allclose(loss4, ref4, rtol=1e-4, atol=1e-4), (loss4, ref4)

    print("KERNEL_OK")
</pallas_src>

<mosaic_0001>
module attributes {stable_mosaic.version = 11 : i64} {
  func.func @_triplet_partial_kernel(%arg0: i32, %arg1: memref<8x128xf32, #tpu.memory_space<vmem>>, %arg2: memref<8x128xf32, #tpu.memory_space<vmem>>, %arg3: memref<8x128xf32, #tpu.memory_space<vmem>>, %arg4: memref<1x1x1xf32, #tpu.memory_space<vmem>>) attributes {dimension_semantics = [#tpu.dimension_semantics<parallel>], iteration_bounds = array<i64: 1>, scalar_prefetch = 0 : i64, scratch_operands = 0 : i64, tpu.core_type = #tpu.core_type<tc>, window_params = [{transform_indices = @transform_0, window_bounds = array<i64: 8, 128>}, {transform_indices = @transform_1, window_bounds = array<i64: 8, 128>}, {transform_indices = @transform_2, window_bounds = array<i64: 8, 128>}, {transform_indices = @transform_3, window_bounds = array<i64: 1, 1, 1>}]} {
    %c0 = arith.constant 0 : index
    %c0_0 = arith.constant 0 : index
    %0 = vector.load %arg1[%c0, %c0_0] : memref<8x128xf32, #tpu.memory_space<vmem>>, vector<8x128xf32>
    %c0_1 = arith.constant 0 : index
    %c0_2 = arith.constant 0 : index
    %1 = vector.load %arg2[%c0_1, %c0_2] : memref<8x128xf32, #tpu.memory_space<vmem>>, vector<8x128xf32>
    %c0_3 = arith.constant 0 : index
    %c0_4 = arith.constant 0 : index
    %2 = vector.load %arg3[%c0_3, %c0_4] : memref<8x128xf32, #tpu.memory_space<vmem>>, vector<8x128xf32>
    %3 = arith.subf %0, %1 : vector<8x128xf32>
    %4 = arith.subf %0, %2 : vector<8x128xf32>
    %5 = arith.mulf %3, %3 : vector<8x128xf32>
    %cst = arith.constant dense<0.000000e+00> : vector<8xf32>
    %6 = vector.multi_reduction <add>, %5, %cst [1] : vector<8x128xf32> to vector<8xf32>
    %7 = vector.shape_cast %6 : vector<8xf32> to vector<8x1xf32>
    %8 = arith.mulf %4, %4 : vector<8x128xf32>
    %cst_5 = arith.constant dense<0.000000e+00> : vector<8xf32>
    %9 = vector.multi_reduction <add>, %8, %cst_5 [1] : vector<8x128xf32> to vector<8xf32>
    %10 = vector.shape_cast %9 : vector<8xf32> to vector<8x1xf32>
    %11 = math.sqrt %7 : vector<8x1xf32>
    %12 = math.sqrt %10 : vector<8x1xf32>
    %13 = arith.subf %11, %12 : vector<8x1xf32>
    %cst_6 = arith.constant 1.000000e+00 : f32
    %14 = vector.broadcast %cst_6 : f32 to vector<8x1xf32>
    %15 = arith.addf %13, %14 : vector<8x1xf32>
    %cst_7 = arith.constant 0.000000e+00 : f32
    %16 = vector.broadcast %cst_7 : f32 to vector<8x1xf32>
    %17 = arith.maximumf %15, %16 : vector<8x1xf32>
    %c8_i32 = arith.constant 8 : i32
    %18 = arith.muli %arg0, %c8_i32 : i32
    %19 = tpu.iota {dimensions = array<i32: 0>} : vector<8x1xi32>
    %20 = vector.broadcast %18 : i32 to vector<8x1xi32>
    %21 = arith.addi %20, %19 : vector<8x1xi32>
    %c8_i32_8 = arith.constant 8 : i32
    %22 = vector.broadcast %c8_i32_8 : i32 to vector<8x1xi32>
    %23 = arith.cmpi slt, %21, %22 : vector<8x1xi32>
    %cst_9 = arith.constant 0.000000e+00 : f32
    %24 = vector.broadcast %cst_9 : f32 to vector<8x1xf32>
    %25 = arith.select %23, %17, %24 : vector<8x1xi1>, vector<8x1xf32>
    %cst_10 = arith.constant dense<0.000000e+00> : vector<1xf32>
    %26 = vector.multi_reduction <add>, %25, %cst_10 [0] : vector<8x1xf32> to vector<1xf32>
    %27 = vector.shape_cast %26 : vector<1xf32> to vector<1x1xf32>
    %28 = vector.shape_cast %27 : vector<1x1xf32> to vector<1x1x1xf32>
    %c0_11 = arith.constant 0 : index
    %c0_12 = arith.constant 0 : index
    %c0_13 = arith.constant 0 : index
    %29 = vector.load %arg4[%c0_11, %c0_12, %c0_13] : memref<1x1x1xf32, #tpu.memory_space<vmem>>, vector<1x1x1xf32>
    tpu.vector_store %arg4[%c0_11, %c0_12, %c0_13], %28 {strides = array<i32>} : memref<1x1x1xf32, #tpu.memory_space<vmem>>, vector<1x1x1xf32>,
    return
  }
  func.func @transform_0(%arg0: i32) -> (i32, i32) {
    %c0_i32 = arith.constant 0 : i32
    %c0_i32_0 = arith.constant 0 : i32
    return %arg0, %c0_i32 : i32, i32
  }
  func.func @transform_1(%arg0: i32) -> (i32, i32) {
    %c0_i32 = arith.constant 0 : i32
    %c0_i32_0 = arith.constant 0 : i32
    return %arg0, %c0_i32 : i32, i32
  }
  func.func @transform_2(%arg0: i32) -> (i32, i32) {
    %c0_i32 = arith.constant 0 : i32
    %c0_i32_0 = arith.constant 0 : i32
    return %arg0, %c0_i32 : i32, i32
  }
  func.func @transform_3(%arg0: i32) -> (i32, i32, i32) {
    %c0_i32 = arith.constant 0 : i32
    %c0_i32_0 = arith.constant 0 : i32
    %c0_i32_1 = arith.constant 0 : i32
    return %arg0, %c0_i32, %c0_i32_0 : i32, i32, i32
  }
}

</mosaic_0001>

<llo_original>
// kernel: tpu_custom_call.1
$region0: #{tpu_custom_call.1}
  #allocation0 [shape = 'u32[]', space=smem, size = 0x4, offset = 0x4, fixed_abs, tag = 'smem constant byte address 0x4 - core index']
  #allocation1 [shape = 'u32[72,128]{1,0:T(1,128)}', space=vmem, size = 0x9000, scoped, tag = 'internal scratch']
  %s0 = inlined_call_operand.hbm [shape: f32[8,128], index: 0, kind: input, shape index: {}]
  %s1 = inlined_call_operand.hbm [shape: f32[8,128], index: 1, kind: input, shape index: {}]
  %s2 = inlined_call_operand.hbm [shape: f32[8,128], index: 2, kind: input, shape index: {}]
  %s3 = inlined_call_operand.hbm [shape: f32[1,1,1], index: 3, kind: output, shape index: {}]
  %s4 = sld [smem:[#allocation0]]
  $region34: #{tpu_custom_call.1} parent=0
    _
  %s6 = ssub.s32 1, %s4
  %s7 = scalar_select 0, %s6, %s4
  $region1: #{tpu_custom_call.1} parent=0
    #allocation2 [shape = 'u8[4096]{0}', space=vmem, size = 0x1000, scoped, tag = 'input window, operand 0, single buffered']
    #allocation3 [shape = 's32[1]{0}', space=sflag, size = 0x4, scoped, tag = 'scoped memory for tpu_custom_call.1']
    #allocation4 [shape = 's32[1]{0}', space=sflag, size = 0x4, scoped, tag = 'scoped memory for tpu_custom_call.1']
    #allocation5 [shape = 'u8[4096]{0}', space=vmem, size = 0x1000, scoped, tag = 'input window, operand 1, single buffered']
    #allocation6 [shape = 's32[1]{0}', space=sflag, size = 0x4, scoped, tag = 'scoped memory for tpu_custom_call.1']
    #allocation7 [shape = 'u8[4096]{0}', space=vmem, size = 0x1000, scoped, tag = 'input window, operand 2, single buffered']
    #allocation8 [shape = 'u8[512]{0}', space=vmem, size = 0x400, scoped, tag = 'output window, operand 0, single buffered']
    %8 = vsyncpa [#allocation3], 0
    %9 = vsyncpa [#allocation6], 0
    %10 = vsyncpa [#allocation4], 0
    // Predicated region
    $region2: #{tpu_custom_call.1} parent=1 // pred_check
      _
    $region3: #{tpu_custom_call.1} parent=1 // pred_check_branch
      %12 = sbr.rel (0) target = $region5
    $region4: #{tpu_custom_call.1} parent=1 // pred_region
      %14 = vsyncadd [#allocation3], 0
      %s16 = sshll.u32 %s0, 4
      %s17 = int_to_ptr.hbm [resolvable:$true] %s16
      %s18 = sshll.u32 [#allocation2], 4
      %s19 = int_to_ptr.vmem [resolvable:$true] %s18
      %21 = dma.hbm_to_vmem [thread:$0]  %s17, 128, %s19, [#allocation3]
    $region5: #{tpu_custom_call.1} parent=1 // pred_fallthru
      _
    // Predicated region
    $region6: #{tpu_custom_call.1} parent=1 // pred_check
      _
    $region7: #{tpu_custom_call.1} parent=1 // pred_check_branch
      %23 = sbr.rel (0) target = $region9
    $region8: #{tpu_custom_call.1} parent=1 // pred_region
      %25 = vsyncadd [#allocation6], 0
      %s27 = sshll.u32 %s1, 4
      %s28 = int_to_ptr.hbm [resolvable:$true] %s27
      %s29 = sshll.u32 [#allocation5], 4
      %s30 = int_to_ptr.vmem [resolvable:$true] %s29
      %32 = dma.hbm_to_vmem [thread:$0]  %s28, 128, %s30, [#allocation6]
    $region9: #{tpu_custom_call.1} parent=1 // pred_fallthru
      _
    // Predicated region
    $region10: #{tpu_custom_call.1} parent=1 // pred_check
      _
    $region11: #{tpu_custom_call.1} parent=1 // pred_check_branch
      %34 = sbr.rel (0) target = $region13
    $region12: #{tpu_custom_call.1} parent=1 // pred_region
      %36 = vsyncadd [#allocation6], 0
      %s38 = sshll.u32 %s2, 4
      %s39 = int_to_ptr.hbm [resolvable:$true] %s38
      %s40 = sshll.u32 [#allocation7], 4
      %s41 = int_to_ptr.vmem [resolvable:$true] %s40
      %43 = dma.hbm_to_vmem [thread:$0]  %s39, 128, %s41, [#allocation6]
    $region13: #{tpu_custom_call.1} parent=1 // pred_fallthru
      _
    // Predicated region
    $region14: #{tpu_custom_call.1} parent=1 // pred_check
      _
    $region15: #{tpu_custom_call.1} parent=1 // pred_check_branch
      %45 = sbr.rel (0) target = $region17
    $region16: #{tpu_custom_call.1} parent=1 // pred_region
      %47 = dma.done [#allocation3], 128
    $region17: #{tpu_custom_call.1} parent=1 // pred_fallthru
      _
    // Predicated region
    $region18: #{tpu_custom_call.1} parent=1 // pred_check
      _
    $region19: #{tpu_custom_call.1} parent=1 // pred_check_branch
      %49 = sbr.rel (0) target = $region21
    $region20: #{tpu_custom_call.1} parent=1 // pred_region
      %51 = dma.done [#allocation6], 128
    $region21: #{tpu_custom_call.1} parent=1 // pred_fallthru
      _
    // Predicated region
    $region22: #{tpu_custom_call.1} parent=1 // pred_check
      _
    $region23: #{tpu_custom_call.1} parent=1 // pred_check_branch
      %53 = sbr.rel (0) target = $region25
    $region24: #{tpu_custom_call.1} parent=1 // pred_region
      %55 = dma.done [#allocation6], 128
    $region25: #{tpu_custom_call.1} parent=1 // pred_fallthru
      _
    %v56 = vld [vmem:[#allocation2] sm:$0xff]
    %v57 = vld [vmem:[#allocation5] sm:$0xff]
    %v58 = vld [vmem:[#allocation7] sm:$0xff]
    %v59 = vsub.f32 %v56, %v57
    %v60 = vsub.f32 %v56, %v58
    %v61 = vmul.f32 %v59, %v59
    %62 = vadd.xlane.f32.xlu0 %v61
    %v63 = vpop.xlane.xlu0 %62
    %v64 = vmul.f32 %v60, %v60
    %65 = vadd.xlane.f32.xlu0 %v64
    %v66 = vpop.xlane.xlu0 %65
    %v67 = vrsqrt.pop %v63
    %v68 = vmul.f32 %v67, %v63
    %v69 = vmul.f32 %v68, %v67
    %v70 = vmul.f32 0.5, %v69
    %v71 = vsub.f32 1.5, %v70
    %v72 = vmul.f32 %v67, %v71
    %v73 = vmul.f32 %v63, %v72
    %vm74 = vcmp.eq.f32.partialorder %v63, inf
    %v75 = vsel %vm74, %v63, %v73
    %vm76 = vcmp.eq.f32.partialorder %v63, 0.0
    %v77 = vand.u32 %v63, 2147483648
    %v78 = vsel %vm76, %v77, %v75
    %v79 = vrsqrt.pop %v66
    %v80 = vmul.f32 %v79, %v66
    %v81 = vmul.f32 %v80, %v79
    %v82 = vmul.f32 0.5, %v81
    %v83 = vsub.f32 1.5, %v82
    %v84 = vmul.f32 %v79, %v83
    %v85 = vmul.f32 %v66, %v84
    %vm86 = vcmp.eq.f32.partialorder %v66, inf
    %v87 = vsel %vm86, %v66, %v85
    %vm88 = vcmp.eq.f32.partialorder %v66, 0.0
    %v89 = vand.u32 %v66, 2147483648
    %v90 = vsel %vm88, %v89, %v87
    %v91 = vsub.f32 %v78, %v90
    %v92 = vadd.f32 %v91, 1.0
    %v93 = vmax.f32 %v92, 0.0
    %s94 = smul.u32 0, 8
    %v95 = vlaneseq
    %v96 = vshrl.u32 %v95, 7
    %v97 = vstv %s94
    %v98 = vadd.s32 %v97, %v96
    %vm99 = vcmp.lt.s32.totalorder %v98, 8
    %v100 = vsel %vm99, %v93, 0.0
    %v101 = vrot.slane %v100, 4
    %v102 = vadd.f32 %v100, %v101
    %v103 = vrot.slane %v102, 2
    %v104 = vadd.f32 %v102, %v103
    %v105 = vrot.slane %v104, 1
    %v106 = vadd.f32 %v104, %v105
    %vm107 = vcmask 0
    %108 = vst.msk [vmem:[#allocation8] sm:$0x1] %vm107, %v106
    // Predicated region
    $region26: #{tpu_custom_call.1} parent=1 // pred_check
      _
    $region27: #{tpu_custom_call.1} parent=1 // pred_check_branch
      %110 = sbr.rel (0) target = $region29
    $region28: #{tpu_custom_call.1} parent=1 // pred_region
      %112 = vsyncadd [#allocation4], 0
      %s114 = sshll.u32 [#allocation8], 4
      %s115 = int_to_ptr.vmem [resolvable:$true] %s114
      %s116 = sshll.u32 %s3, 4
      %s117 = int_to_ptr.hbm [resolvable:$true] %s116
      %119 = dma.vmem_to_hbm [thread:$0]  %s115, 16, %s117, [#allocation4]
    $region29: #{tpu_custom_call.1} parent=1 // pred_fallthru
      _
    // Predicated region
    $region30: #{tpu_custom_call.1} parent=1 // pred_check
      _
    $region31: #{tpu_custom_call.1} parent=1 // pred_check_branch
      %121 = sbr.rel (0) target = $region33
    $region32: #{tpu_custom_call.1} parent=1 // pred_region
      %123 = dma.done [#allocation4], 16
    $region33: #{tpu_custom_call.1} parent=1 // pred_fallthru
      _
    %124 = vsyncpa [#allocation3], 1
    %125 = vsyncpa [#allocation6], 1
    %126 = vsyncpa [#allocation4], 1

</llo_original>
